<compile_context>
chip_gen: v7x
topology: tpu7x:2x2x1
jax: 0.10.0
libtpu: 0.0.40
codegen_flags: <defaults>
</compile_context>

<pallas_src>
import functools

import jax
import jax.numpy as jnp
import numpy as np
from jax import lax
from jax.experimental import pallas as pl
from jax.experimental.pallas import tpu as pltpu


def _round_up(a, b):
    return (a + b - 1) // b * b


def _vmem_capacity_bytes(default=64 * 1024 * 1024):
    """Best-effort physical VMEM capacity (v5e/v6e: 128 MiB, v7x: 64 MiB per TC)."""
    try:
        info = pltpu.get_tpu_info()
        cap = getattr(info, "vmem_capacity_bytes", None)
        if cap:
            return int(cap)
    except Exception:
        pass
    return default


def _choose_fold(H, W, KK):
    """Fold G H-rows into the lane dim so the output minor dim (G*KK*W) reaches >=128."""
    if W * KK >= 128 or H == 1:
        return 1
    divs = [d for d in range(1, H + 1) if H % d == 0]
    for g in divs:                      # prefer keeping (H // g) a multiple of 8
        if g * KK * W >= 128 and (H // g) % 8 == 0:
            return g
    for g in divs:
        if g * KK * W >= 128:
            return g
    return divs[-1]                     # truly tiny problem


def _expansion_matrix_single(W, k, G, mode, dtype):
    """E for the single-matmul path: (G*W, G*k*k*W), covers all row/col phases."""
    KK, Wk = k * k, W * k
    e = np.zeros((G * W, G * KK * W), dtype=np.float32)
    for g in range(G):
        for w in range(W):
            row = g * W + w
            if mode == "zero":
                e[row, g * KK * W + w * k] = 1.0
            else:  # nearest
                for i in range(k):
                    col0 = g * KK * W + i * Wk + w * k
                    e[row, col0:col0 + k] = 1.0
    return jnp.asarray(e, dtype=dtype)


def _expansion_matrix_chunk(tw, k, mode, dtype):
    """E for the chunked path: (tw, tw*k), row phase 0 only."""
    e = np.zeros((tw, tw * k), dtype=np.float32)
    for w in range(tw):
        if mode == "zero":
            e[w, w * k] = 1.0
        else:
            e[w, w * k:w * k + k] = 1.0
    return jnp.asarray(e, dtype=dtype)


def _choose_row_tile(N, HB, footprint, budget):
    """Largest H-row tile (multiple of 8, or full HB) whose footprint fits the budget;
    prefers tiles that leave >=2 grid steps for the 2 TensorCores on v7x."""
    cands = [d for d in range(1, HB + 1) if HB % d == 0 and (d % 8 == 0 or d == HB)]
    fitting = [d for d in cands if footprint(d) <= budget]
    if fitting:
        best = max(fitting, key=lambda d: (N * (HB // d) >= 2, d))
        return best, True
    # No dividing tile fits: clamp to a multiple of 8 and use a cdiv grid
    # (partial last block) instead of silently exceeding VMEM.
    th = 8 if HB >= 8 else HB
    while th + 8 <= HB and footprint(th + 8) <= budget:
        th += 8
    return th, (HB % th == 0)


# --------------------------------------------------------------------------- kernels


def _unpool_kernel_single(e_ref, x_ref, o_ref, *, precision):
    # e_ref: (WL, OL) constant expansion matrix (fetched once)
    # x_ref: (1, C, TH, WL)   input tile (possibly G H-rows folded into lanes)
    # o_ref: (1, C, TH, OL)   output tile, OL = WL * k * k, lane-dense
    _, C, TH, WL = x_ref.shape
    OL = o_ref.shape[-1]
    x = x_ref[...].reshape(C * TH, WL)
    y = lax.dot_general(x, e_ref[...], (((1,), (0,)), ((), ())),
                        preferred_element_type=jnp.float32,
                        precision=precision)
    o_ref[...] = y.astype(o_ref.dtype).reshape(1, C, TH, OL)


def _unpool_kernel_chunked(e_ref, x_ref, o_ref, *, k, mode, chunks, precision):
    # e_ref: (TW, TW*k) constant expansion matrix for one W chunk (row phase 0)
    # x_ref: (1, C, TH, W)
    # o_ref: (1, C, TH, k*k*W)  minor dim = [row phase i][W*k lanes]
    _, C, TH, W = x_ref.shape
    Wk = W * k
    KK = k * k
    for off, cw in chunks:
        xc = x_ref[:, :, :, off:off + cw].reshape(C * TH, cw)
        ec = e_ref[0:cw, 0:cw * k]
        y = lax.dot_general(xc, ec, (((1,), (0,)), ((), ())),
                            preferred_element_type=jnp.float32,
                            precision=precision)
        y = y.astype(o_ref.dtype).reshape(1, C, TH, cw * k)
        o_ref[:, :, :, off * k:off * k + cw * k] = y            # row phase 0
        if mode == "nearest":
            for i in range(1, k):
                base = i * Wk + off * k
                o_ref[:, :, :, base:base + cw * k] = y
    if mode == "zero" and k > 1:
        o_ref[:, :, :, Wk:KK * W] = jnp.zeros((1, C, TH, (k - 1) * Wk), o_ref.dtype)


# --------------------------------------------------------------------------- wrapper


def _reference_unpool(x, k=2, mode="zero"):
    N, C, H, W = x.shape
    if mode == "zero":
        y = jnp.zeros((N, C, H, k, W, k), x.dtype)
        y = y.at[:, :, :, 0, :, 0].set(x)
    else:
        y = jnp.broadcast_to(x[:, :, :, None, :, None], (N, C, H, k, W, k))
    return y.reshape(N, C, H * k, W * k)


def upsample(x, k=2, mode="zero", *, row_tile=None, lane_tile=256):
    """Pallas implementation of Upsample.forward == Unpool2D(kernel=k, mode) on NCHW."""
    if mode in ("repeat", "nearest"):
        mode = "nearest"
    elif mode != "zero":
        # TODO(synk): vendor Unpool2D modes other than 'zero'/'nearest' (e.g. bilinear)
        # are not implemented.
        raise NotImplementedError(f"unsupported mode: {mode}")
    assert lane_tile % 128 == 0, lane_tile

    N, C, H, W = x.shape
    KK = k * k
    if k == 1:
        return x  # 1x1 unpool is the identity in both modes

    if not jnp.issubdtype(x.dtype, jnp.floating):
        # TODO(synk): integer/quantized inputs need a non-MXU expansion path
        # (v7x MXU is bf16/fp8 only); use the plain XLA formulation for them.
        return _reference_unpool(x, k, mode)

    itemsize = jnp.dtype(x.dtype).itemsize
    vmem_cap = _vmem_capacity_bytes()
    budget = max(8 << 20, int(vmem_cap * 0.45))
    precision = (lax.Precision.HIGHEST if x.dtype == jnp.float32
                 else lax.Precision.DEFAULT)

    chunked = W > lane_tile
    if chunked:
        # In-kernel static loop over 256-lane W chunks (remainder chunk allowed).
        G = 1
        WL, OL = W, KK * W
        chunks, off = [], 0
        while off < W:
            cw = min(lane_tile, W - off)
            chunks.append((off, cw))
            off += cw
        chunks = tuple(chunks)
        e = _expansion_matrix_chunk(lane_tile, k, mode, x.dtype)
        acc_cols = lane_tile * k
        kernel = functools.partial(_unpool_kernel_chunked, k=k, mode=mode,
                                   chunks=chunks, precision=precision)
        flops = 2 * N * C * H * k * sum(cw * cw for _, cw in chunks)
    else:
        # Single matmul per block; fold G H-rows into the lanes when k*k*W < 128.
        G = _choose_fold(H, W, KK)
        WL, OL = G * W, G * KK * W
        e = _expansion_matrix_single(W, k, G, mode, x.dtype)
        acc_cols = OL
        kernel = functools.partial(_unpool_kernel_single, precision=precision)
        flops = 2 * N * C * H * KK * W * WL

    HB = H // G
    x_in = x.reshape(N, C, HB, WL) if G > 1 else x   # contiguous (free) reshape
    e_rows, e_cols = e.shape

    # VMEM footprint: double-buffered in/out blocks ((8,128)-padded), double-buffered E,
    # and the fp32 matmul intermediate.
    e_bytes = 2 * _round_up(e_rows, 8) * _round_up(e_cols, 128) * itemsize

    def footprint(th):
        th8 = _round_up(th, 8)
        in_b = C * th8 * _round_up(WL, 128) * itemsize
        out_b = C * th8 * _round_up(OL, 128) * itemsize
        acc_b = C * th8 * _round_up(acc_cols, 128) * 4
        return 2 * (in_b + out_b) + e_bytes + acc_b

    if row_tile is not None:
        TH = int(row_tile)
        if HB % TH != 0 or not (TH % 8 == 0 or TH == HB):
            raise ValueError(f"row_tile={TH} incompatible with (folded) H={HB}")
        divides = True
    else:
        TH, divides = _choose_row_tile(N, HB, footprint, budget)

    grid_h = (HB // TH) if divides else pl.cdiv(HB, TH)
    vmem_limit = int(min(vmem_cap,
                         max(32 << 20, footprint(TH) + footprint(TH) // 4 + (4 << 20))))

    cost = pl.CostEstimate(
        flops=int(flops),
        transcendentals=0,
        bytes_accessed=int(N * C * H * W * itemsize * (1 + KK) + e.size * itemsize),
    )

    out_flat = pl.pallas_call(
        kernel,
        out_shape=jax.ShapeDtypeStruct((N, C, HB, OL), x.dtype),
        grid=(N, grid_h),
        in_specs=[
            pl.BlockSpec((e_rows, e_cols), lambda n, h: (0, 0)),       # fetched once
            pl.BlockSpec((1, C, TH, WL), lambda n, h: (n, 0, h, 0)),
        ],
        out_specs=pl.BlockSpec((1, C, TH, OL), lambda n, h: (n, 0, h, 0)),
        compiler_params=pltpu.CompilerParams(
            dimension_semantics=("parallel", "parallel"),
            vmem_limit_bytes=vmem_limit,
        ),
        cost_estimate=cost,
    )(e, x_in)

    # Contiguous (free) reshape back to NCHW: (N, C, HB, OL) -> (N, C, H*k, W*k).
    return out_flat.reshape(N, C, H * k, W * k)


if __name__ == "__main__":
    key = jax.random.PRNGKey(0)
    k_x, k_w = jax.random.split(key)

    # Small spatial size (exercises the H-row lane-folding path).
    N, C, H, W = 2, 4, 16, 16
    k = 2
    x = jax.random.normal(k_x, (N, C, H, W), dtype=jnp.float32)

    out = jax.block_until_ready(upsample(x, k, mode="zero"))
    ref = _reference_unpool(x, k, "zero")
    assert out.shape == (N, C, H * k, W * k), out.shape
    np.testing.assert_allclose(np.asarray(out), np.asarray(ref), rtol=1e-6, atol=1e-6)

    # nearest / repeat mode
    out_nn = jax.block_until_ready(upsample(x, k, mode="nearest"))
    ref_nn = _reference_unpool(x, k, "nearest")
    np.testing.assert_allclose(np.asarray(out_nn), np.asarray(ref_nn), rtol=1e-6, atol=1e-6)

    # Wider W exercises the in-kernel 256-lane chunked path (incl. a remainder chunk).
    x2 = jax.random.normal(k_w, (1, 2, 8, 384), dtype=jnp.float32)
    out2 = jax.block_until_ready(upsample(x2, k, mode="zero"))
    ref2 = _reference_unpool(x2, k, "zero")
    np.testing.assert_allclose(np.asarray(out2), np.asarray(ref2), rtol=1e-6, atol=1e-6)

    print("KERNEL_OK")
</pallas_src>

<mosaic_0001>
module attributes {stable_mosaic.version = 11 : i64} {
  func.func @_unpool_kernel_single(%arg0: i32, %arg1: i32, %arg2: memref<32x128xf32, #tpu.memory_space<vmem>>, %arg3: memref<1x4x8x32xf32, #tpu.memory_space<vmem>>, %arg4: memref<1x4x8x128xf32, #tpu.memory_space<vmem>>) attributes {dimension_semantics = [#tpu.dimension_semantics<parallel>, #tpu.dimension_semantics<parallel>], iteration_bounds = array<i64: 2, 1>, scalar_prefetch = 0 : i64, scratch_operands = 0 : i64, tpu.core_type = #tpu.core_type<tc>, window_params = [{pipeline_mode = #tpu.pipeline_mode<synchronous>, transform_indices = @transform_0, window_bounds = array<i64: 32, 128>}, {transform_indices = @transform_1, window_bounds = array<i64: 1, 4, 8, 32>}, {transform_indices = @transform_2, window_bounds = array<i64: 1, 4, 8, 128>}]} {
    %c0 = arith.constant 0 : index
    %c0_0 = arith.constant 0 : index
    %c0_1 = arith.constant 0 : index
    %c0_2 = arith.constant 0 : index
    %0 = vector.load %arg3[%c0, %c0_0, %c0_1, %c0_2] : memref<1x4x8x32xf32, #tpu.memory_space<vmem>>, vector<1x4x8x32xf32>
    %1 = vector.shape_cast %0 : vector<1x4x8x32xf32> to vector<32x32xf32>
    %c0_3 = arith.constant 0 : index
    %c0_4 = arith.constant 0 : index
    %2 = vector.load %arg2[%c0_3, %c0_4] : memref<32x128xf32, #tpu.memory_space<vmem>>, vector<32x128xf32>
    %cst = arith.constant dense<0.000000e+00> : vector<32x128xf32>
    %3 = tpu.matmul %1, %2, %cst {dimension_numbers = #tpu.dot_dimension_numbers<[1], [0], [0], [1], [0, 0, 1, 1], [], []>, precision = #tpu.contract_precision<fp32>} : vector<32x32xf32>, vector<32x128xf32>, vector<32x128xf32> -> vector<32x128xf32>
    %4 = vector.shape_cast %3 : vector<32x128xf32> to vector<1x4x8x128xf32>
    %c0_5 = arith.constant 0 : index
    %c0_6 = arith.constant 0 : index
    %c0_7 = arith.constant 0 : index
    %c0_8 = arith.constant 0 : index
    %5 = vector.load %arg4[%c0_5, %c0_6, %c0_7, %c0_8] : memref<1x4x8x128xf32, #tpu.memory_space<vmem>>, vector<1x4x8x128xf32>
    tpu.vector_store %arg4[%c0_5, %c0_6, %c0_7, %c0_8], %4 {strides = array<i32>} : memref<1x4x8x128xf32, #tpu.memory_space<vmem>>, vector<1x4x8x128xf32>,
    return
  }
  func.func @transform_0(%arg0: i32, %arg1: i32) -> (i32, i32) {
    %c0_i32 = arith.constant 0 : i32
    %c0_i32_0 = arith.constant 0 : i32
    %c0_i32_1 = arith.constant 0 : i32
    return %c0_i32, %c0_i32_0 : i32, i32
  }
  func.func @transform_1(%arg0: i32, %arg1: i32) -> (i32, i32, i32, i32) {
    %c0_i32 = arith.constant 0 : i32
    %c0_i32_0 = arith.constant 0 : i32
    %c0_i32_1 = arith.constant 0 : i32
    return %arg0, %c0_i32, %arg1, %c0_i32_0 : i32, i32, i32, i32
  }
  func.func @transform_2(%arg0: i32, %arg1: i32) -> (i32, i32, i32, i32) {
    %c0_i32 = arith.constant 0 : i32
    %c0_i32_0 = arith.constant 0 : i32
    %c0_i32_1 = arith.constant 0 : i32
    return %arg0, %c0_i32, %arg1, %c0_i32_0 : i32, i32, i32, i32
  }
}

</mosaic_0001>

<llo_original>
// kernel: tpu_custom_call.1
$region0: #{tpu_custom_call.1}
  #allocation0 [shape = 'u32[]', space=smem, size = 0x4, offset = 0x4, fixed_abs, tag = 'smem constant byte address 0x4 - core index']
  #allocation1 [shape = 'u32[144,128]{1,0:T(1,128)}', space=vmem, size = 0x12000, scoped, tag = 'internal scratch']
  %s0 = inlined_call_operand.hbm [shape: f32[32,128], index: 0, kind: input, shape index: {}]
  %s1 = inlined_call_operand.hbm [shape: f32[2,4,8,32], index: 1, kind: input, shape index: {}]
  %s2 = inlined_call_operand.hbm [shape: f32[2,4,8,128], index: 2, kind: output, shape index: {}]
  %s3 = sld [smem:[#allocation0]]
  $region49: #{tpu_custom_call.1} parent=0
    _
  %s5 = ssub.s32 1, %s3
  %s6 = scalar_select 0, %s5, %s3
  $region1: #{tpu_custom_call.1} parent=0
    #allocation2 [shape = 'u8[16384]{0}', space=vmem, size = 0x4000, scoped, tag = 'input window, operand 0, single buffered']
    #allocation3 [shape = 's32[2]{0}', space=sflag, size = 0x8, scoped, tag = 'scoped memory for tpu_custom_call.1']
    #allocation4 [shape = 's32[2]{0}', space=sflag, size = 0x8, scoped, tag = 'scoped memory for tpu_custom_call.1']
    #allocation5 [shape = 'u8[32768]{0}', space=vmem, size = 0x8000, scoped, tag = 'input window, operand 1']
    #allocation6 [shape = 's32[2]{0}', space=sflag, size = 0x8, scoped, tag = 'scoped memory for tpu_custom_call.1']
    #allocation7 [shape = 'u8[32768]{0}', space=vmem, size = 0x8000, scoped, tag = 'output window, operand 0']
    %7 = vsyncpa [#allocation3], 0
    %8 = vsyncpa [#allocation6], 0
    %s9 = scalar_lea.sflag [#allocation6], 1
    %10 = vsyncpa %s9, 0
    %11 = vsyncpa [#allocation4], 0
    %s12 = scalar_lea.sflag [#allocation4], 1
    %13 = vsyncpa %s12, 0
    loop: start=0, step=1, limit=4
    $region2: #{tpu_custom_call.1} parent=1 // loop_pre_header
      _
    $region3: #{tpu_custom_call.1} parent=1 // loop_header
      %s15 = sphi 0, %s19
      %p16 = scmp.ge.s32.totalorder %s15, 4
      %s22 = sphi 0, %s34
      %s23 = sphi 0, %s30
      %s24 = sphi 0, %s22
      %s25 = sphi 0, %s23
      %s26 = sphi 0, %s24
      %s27 = sphi 0, %s25
      %s35 = sphi 0, %s35
      %s37 = sphi 0, %s35
      %s38 = sphi 0, %s37
      %s52 = sphi 0, %s38
      %s60 = sphi 0, %s62
      %s63 = sphi 0, %s60
      %s64 = sphi 0, %s63
      %s80 = sphi 0, %s64
      %s88 = sphi 0, %s90
      %s91 = sphi 0, %s88
      %s92 = sphi 0, %s91
      %s108 = sphi 0, %s92
    $region4: #{tpu_custom_call.1} parent=1 // loop_header_branch
      %18 = sbr.rel (%p16) target = $region8
    $region5: #{tpu_custom_call.1} parent=1 // loop_body
      %s20 = ssub.s32 %s15, 1
      %s21 = ssub.s32 %s15, 2
      %s28 = sadd.s32 1, %s23
      %p29 = scmp.ge.s32.totalorder %s28, 1
      %s30 = scalar_select %p29, 0, %s28
      %s31 = sadd.s32 1, %s22
      %s32 = scalar_select %p29, %s31, %s22
      %p33 = scmp.ge.s32.totalorder %s32, 2
      %s34 = scalar_select %p33, 0, %s32
      %s36 = sadd.s32 %s35, 1
      %p39 = scmp.eq.s32.totalorder %s15, 1
      %p40 = scmp.ne.s32.totalorder %s35, %s37
      %p41 = scmp.eq.s32.totalorder %s15, 0
      %p42 = por %p40, %p41
      %p43 = scmp.ne.s32.totalorder %s35, %s37
      %p44 = scmp.eq.s32.totalorder %s20, 1
      %p45 = por %p43, %p44
      %p46 = scmp.ne.s32.totalorder %s37, %s38
      %p47 = scmp.eq.s32.totalorder %s20, 0
      %p48 = por %p46, %p47
      %p49 = scmp.ne.s32.totalorder %s37, %s38
      %p50 = scmp.eq.s32.totalorder %s21, 1
      %p51 = por %p49, %p50
      %p53 = scmp.ne.s32.totalorder %s38, %s52
      %p54 = scmp.eq.s32.totalorder %s21, 0
      %p55 = por %p53, %p54
      %s56 = ssub.s32 %s22, %s34
      %s57 = ssub.s32 %s23, %s30
      %s58 = sor.u32 %s56, %s57
      %p59 = scmp.eq.s32.totalorder %s58, 0
      %s61 = sadd.s32 %s60, 1
      %s62 = scalar_select %p59, %s60, %s61
      %p65 = pneg %p59
      %p66 = scmp.eq.s32.totalorder %s15, 1
      %p67 = por %p65, %p66
      %p68 = scmp.ne.s32.totalorder %s60, %s63
      %p69 = scmp.eq.s32.totalorder %s15, 0
      %p70 = por %p68, %p69
      %p71 = scmp.ne.s32.totalorder %s60, %s63
      %p72 = scmp.eq.s32.totalorder %s20, 1
      %p73 = por %p71, %p72
      %p74 = scmp.ne.s32.totalorder %s63, %s64
      %p75 = scmp.eq.s32.totalorder %s20, 0
      %p76 = por %p74, %p75
      %p77 = scmp.ne.s32.totalorder %s63, %s64
      %p78 = scmp.eq.s32.totalorder %s21, 1
      %p79 = por %p77, %p78
      %p81 = scmp.ne.s32.totalorder %s64, %s80
      %p82 = scmp.eq.s32.totalorder %s21, 0
      %p83 = por %p81, %p82
      %s84 = ssub.s32 %s22, %s34
      %s85 = ssub.s32 %s23, %s30
      %s86 = sor.u32 %s84, %s85
      %p87 = scmp.eq.s32.totalorder %s86, 0
      %s89 = sadd.s32 %s88, 1
      %s90 = scalar_select %p87, %s88, %s89
      %p93 = pneg %p87
      %p94 = scmp.eq.s32.totalorder %s15, 1
      %p95 = por %p93, %p94
      %p96 = scmp.ne.s32.totalorder %s88, %s91
      %p97 = scmp.eq.s32.totalorder %s15, 0
      %p98 = por %p96, %p97
      %p99 = scmp.ne.s32.totalorder %s88, %s91
      %p100 = scmp.eq.s32.totalorder %s20, 1
      %p101 = por %p99, %p100
      %p102 = scmp.ne.s32.totalorder %s91, %s92
      %p103 = scmp.eq.s32.totalorder %s20, 0
      %p104 = por %p102, %p103
      %p105 = scmp.ne.s32.totalorder %s91, %s92
      %p106 = scmp.eq.s32.totalorder %s21, 1
      %p107 = por %p105, %p106
      %p109 = scmp.ne.s32.totalorder %s92, %s108
      %p110 = scmp.eq.s32.totalorder %s21, 0
      %p111 = por %p109, %p110
      %p112 = scmp.le.s32.totalorder 1, %s15
      %p113 = scmp.lt.s32.totalorder %s15, 3
      %p114 = pnand %p112, %p113
      %p115 = pneg %p114
      // Predicated region
      $region9: #{tpu_custom_call.1} parent=5 // pred_check
        _
      $region10: #{tpu_custom_call.1} parent=5 // pred_check_branch
        %117 = sbr.rel (%p114) target = $region12
      $region11: #{tpu_custom_call.1} parent=5 // pred_region
        %s118 = ssub.s32 %s15, 1
        // Predicated region
        $region13: #{tpu_custom_call.1} parent=11 // pred_check
          %p119 = pneg %p48
        $region14: #{tpu_custom_call.1} parent=11 // pred_check_branch
          %121 = sbr.rel (%p119) target = $region16
        $region15: #{tpu_custom_call.1} parent=11 // pred_region
          %s123 = ssub.s32 512, 512
          %124 = vsyncadd [#allocation3], %s123
          %s125 = sshll.u32 [#allocation2], 4
          %s126 = int_to_ptr.vmem [resolvable:$true] %s125
          %131 = dma.hbm_to_vmem [thread:$0]  %s0, 512, %s126, [#allocation3], 128, 128, 8
        $region16: #{tpu_custom_call.1} parent=11 // pred_fallthru
          _
      $region12: #{tpu_custom_call.1} parent=5 // pred_fallthru
        _
      %p132 = scmp.lt.s32.totalorder %s15, 2
      // Predicated region
      $region17: #{tpu_custom_call.1} parent=5 // pred_check
        %p133 = pneg %p132
      $region18: #{tpu_custom_call.1} parent=5 // pred_check_branch
        %135 = sbr.rel (%p133) target = $region20
      $region19: #{tpu_custom_call.1} parent=5 // pred_region
        // Predicated region
        $region21: #{tpu_custom_call.1} parent=19 // pred_check
          %p136 = pneg %p70
        $region22: #{tpu_custom_call.1} parent=19 // pred_check_branch
          %138 = sbr.rel (%p136) target = $region24
        $region23: #{tpu_custom_call.1} parent=19 // pred_region
          %s139 = sand.u32 %s60, 1
          %s140 = scalar_lea.sflag [#allocation6], %s139
          %s141 = sand.u32 %s60, 1
          %s142 = smul.addr %s141, 32
          %s143 = scalar_lea.vmem [#allocation5], %s142
          %s145 = ssub.s32 512, 512
          %146 = vsyncadd %s140, %s145
          %s147 = smul.addr %s22, 4
          %s148 = sadd.s32 %s23, %s147
          %s149 = smul.addr %s148, 128
          %s150 = scalar_lea.hbm %s1, %s149
          %s151 = sshll.u32 %s143, 4
          %s152 = int_to_ptr.vmem [resolvable:$true] %s151
          %157 = dma.hbm_to_vmem [thread:$0]  %s150, 512, %s152, %s140, 128, 128, 8
        $region24: #{tpu_custom_call.1} parent=19 // pred_fallthru
          _
      $region20: #{tpu_custom_call.1} parent=5 // pred_fallthru
        _
      %p158 = scmp.le.s32.totalorder 1, %s15
      %p159 = scmp.lt.s32.totalorder %s15, 3
      %p160 = pnand %p158, %p159
      %p161 = pneg %p160
      // Predicated region
      $region25: #{tpu_custom_call.1} parent=5 // pred_check
        _
      $region26: #{tpu_custom_call.1} parent=5 // pred_check_branch
        %163 = sbr.rel (%p160) target = $region28
      $region27: #{tpu_custom_call.1} parent=5 // pred_region
        %s164 = ssub.s32 %s15, 1
        // Predicated region
        $region29: #{tpu_custom_call.1} parent=27 // pred_check
          %p165 = pneg %p48
        $region30: #{tpu_custom_call.1} parent=27 // pred_check_branch
          %167 = sbr.rel (%p165) target = $region32
        $region31: #{tpu_custom_call.1} parent=27 // pred_region
          %168 = dma.done [#allocation3], 512
        $region32: #{tpu_custom_call.1} parent=27 // pred_fallthru
          _
        %s169 = sand.u32 %s63, 1
        %s170 = scalar_lea.sflag [#allocation6], %s169
        %s171 = sand.u32 %s63, 1
        %s172 = smul.addr %s171, 32
        %s173 = scalar_lea.vmem [#allocation5], %s172
        // Predicated region
        $region33: #{tpu_custom_call.1} parent=27 // pred_check
          %p174 = pneg %p76
        $region34: #{tpu_custom_call.1} parent=27 // pred_check_branch
          %176 = sbr.rel (%p174) target = $region36
        $region35: #{tpu_custom_call.1} parent=27 // pred_region
          %177 = dma.done %s170, 512
        $region36: #{tpu_custom_call.1} parent=27 // pred_fallthru
          _
        %p178 = pneg %p48
        %p179 = pneg %p45
        %s180 = sand.u32 %s63, 1
        %s181 = scalar_lea.sflag [#allocation6], %s180
        %s182 = sand.u32 %s63, 1
        %s183 = smul.addr %s182, 32
        %s184 = scalar_lea.vmem [#allocation5], %s183
        %p185 = pneg %p76
        %p186 = pneg %p73
        %p187 = pneg %p104
        %p188 = pneg %p101
        %s189 = sand.u32 %s91, 1
        %s190 = scalar_lea.sflag [#allocation4], %s189
        %s191 = sand.u32 %s91, 1
        %s192 = smul.addr %s191, 32
        %s193 = scalar_lea.vmem [#allocation7], %s192
        %v194 = vld [vmem:[%s173] sm:$0xff]
        %v195 = vld [vmem:[%s173 + $0x8] sm:$0xff]
        %v196 = vld [vmem:[%s173 + $0x10] sm:$0xff]
        %v197 = vld [vmem:[%s173 + $0x18] sm:$0xff]
        %v198 = vld [vmem:[#allocation2] sm:$0xff]
        %v199 = vld [vmem:[#allocation2 + $0x8] sm:$0xff]
        %v200 = vld [vmem:[#allocation2 + $0x10] sm:$0xff]
        %v201 = vld [vmem:[#allocation2 + $0x18] sm:$0xff]
        %vm202 = vcmask 261120
        %v204 = vsel %vm202, %v194, 0
        %v207 = vsel %vm202, %v195, 0
        %v210 = vsel %vm202, %v196, 0
        %v213 = vsel %vm202, %v197, 0
        %215 = vmatprep.subr.mxu0 0.0
        %v216 = vand.u32 %v198, 4294901760
        %217 = vmatpush1.msra.mxu0 %v216
        %218 = vmatprep.subr.mxu0 0.0
        %v219 = vand.u32 %v199, 4294901760
        %220 = vmatpush1.msra.mxu0 %v219
        %221 = vmatprep.subr.mxu0 0.0
        %v222 = vand.u32 %v200, 4294901760
        %223 = vmatpush1.msra.mxu0 %v222
        %224 = vmatprep.subr.mxu0 0.0
        %v225 = vand.u32 %v201, 4294901760
        %226 = vmatpush1.msra.mxu0 %v225
        %227 = vmatprep.subr.mxu0 0.0
        %228 = vmatpush1.msra.mxu0 0.0
        %229 = vmatprep.subr.mxu0 0.0
        %230 = vmatpush1.msra.mxu0 0.0
        %231 = vmatprep.subr.mxu0 0.0
        %232 = vmatpush1.msra.mxu0 0.0
        %233 = vmatprep.subr.mxu0 0.0
        %234 = vmatpush1.msra.mxu0 0.0
        %235 = vmatprep.subr.mxu0 0.0
        %236 = vmatpush1.msra.mxu0 0.0
        %237 = vmatprep.subr.mxu0 0.0
        %238 = vmatpush1.msra.mxu0 0.0
        %239 = vmatprep.subr.mxu0 0.0
        %240 = vmatpush1.msra.mxu0 0.0
        %241 = vmatprep.subr.mxu0 0.0
        %242 = vmatpush1.msra.mxu0 0.0
        %243 = vmatprep.subr.mxu0 0.0
        %244 = vmatpush1.msra.mxu0 0.0
        %245 = vmatprep.subr.mxu0 0.0
        %246 = vmatpush1.msra.mxu0 0.0
        %247 = vmatprep.subr.mxu0 0.0
        %248 = vmatpush1.msra.mxu0 0.0
        %249 = vmatprep.subr.mxu0 0.0
        %250 = vmatpush1.msra.mxu0 0.0
        %251 = vmatprep.subr.mxu0 0.0
        %252 = vmatpush1.msra.mxu0 0.0
        %253 = vmatprep.subr.mxu0 0.0
        %254 = vmatpush1.msra.mxu0 0.0
        %255 = vmatprep.subr.mxu0 0.0
        %256 = vmatpush1.msra.mxu0 0.0
        %257 = vmatprep.subr.mxu0 0.0
        %258 = vmatpush1.msra.mxu0 0.0
        %259 = vmatprep.subr.mxu0 0.0
        %260 = vmatpush1.msra.mxu0 0.0
        %261 = vmatprep.subr.mxu0 0.0
        %262 = vmatpush1.msra.mxu0 0.0
        %263 = vmatprep.subr.mxu0 0.0
        %264 = vmatpush1.msra.mxu0 0.0
        %265 = vmatprep.subr.mxu0 0.0
        %266 = vmatpush1.msra.mxu0 0.0
        %267 = vmatprep.subr.mxu0 0.0
        %268 = vmatpush1.msra.mxu0 0.0
        %269 = vmatprep.subr.mxu0 0.0
        %270 = vmatpush1.msra.mxu0 0.0
        %271 = vmatprep.subr.mxu0 0.0
        %272 = vmatpush1.msra.mxu0 0.0
        %273 = vmatprep.subr.mxu0 0.0
        %274 = vmatpush1.msra.mxu0 0.0
        %275 = vmatprep.subr.mxu0 0.0
        %276 = vmatpush1.msra.mxu0 0.0
        %277 = vmatprep.subr.mxu0 0.0
        %278 = vmatpush1.msra.mxu0 0.0
        %279 = vmatprep.subr.mxu0 0.0
        %280 = vmatpush1.msra.mxu0 0.0
        %281 = vmatprep.subr.mxu0 0.0
        %282 = vmatpush1.msra.mxu0 0.0
        %283 = vmatprep.mubr.f32.mxu0 0.0
        %v284 = vand.u32 %v204, 4294901760
        %v285 = vsub.f32 %v204, %v284
        %v286 = vand.u32 %v285, 4294901760
        %v287 = vsub.f32 %v285, %v286
        %v288 = vand.u32 %v287, 4294901760
        %289 = vmatmul.mubr.f32.gmra.mrb[0].mxu0 %v288
        %v290 = vpop.f32.mrb[0].mxu0
        %v291 = vadd.f32 0.0, %v290
        %v292 = vpop.f32.mrb[0].mxu0
        %293 = vmatprep.mubr.f32.mxu0 0.0
        %v294 = vand.u32 %v207, 4294901760
        %v295 = vsub.f32 %v207, %v294
        %v296 = vand.u32 %v295, 4294901760
        %v297 = vsub.f32 %v295, %v296
        %v298 = vand.u32 %v297, 4294901760
        %299 = vmatmul.mubr.f32.gmra.mrb[0].mxu0 %v298
        %v300 = vpop.f32.mrb[0].mxu0
        %v301 = vadd.f32 0.0, %v300
        %v302 = vpop.f32.mrb[0].mxu0
        %303 = vmatprep.mubr.f32.mxu0 0.0
        %v304 = vand.u32 %v210, 4294901760
        %v305 = vsub.f32 %v210, %v304
        %v306 = vand.u32 %v305, 4294901760
        %v307 = vsub.f32 %v305, %v306
        %v308 = vand.u32 %v307, 4294901760
        %309 = vmatmul.mubr.f32.gmra.mrb[0].mxu0 %v308
        %v310 = vpop.f32.mrb[0].mxu0
        %v311 = vadd.f32 0.0, %v310
        %v312 = vpop.f32.mrb[0].mxu0
        %313 = vmatprep.mubr.f32.mxu0 0.0
        %v314 = vand.u32 %v213, 4294901760
        %v315 = vsub.f32 %v213, %v314
        %v316 = vand.u32 %v315, 4294901760
        %v317 = vsub.f32 %v315, %v316
        %v318 = vand.u32 %v317, 4294901760
        %319 = vmatmul.mubr.f32.gmra.mrb[0].mxu0 %v318
        %v320 = vpop.f32.mrb[0].mxu0
        %v321 = vadd.f32 0.0, %v320
        %v322 = vpop.f32.mrb[0].mxu0
        %323 = vdwg.mxu0
        %324 = vmatprep.subr.mxu0 0.0
        %v325 = vand.u32 %v198, 4294901760
        %v326 = vsub.f32 %v198, %v325
        %v327 = vand.u32 %v326, 4294901760
        %v328 = vsub.f32 %v326, %v327
        %v329 = vand.u32 %v328, 4294901760
        %330 = vmatpush1.msra.mxu0 %v329
        %331 = vmatprep.subr.mxu0 0.0
        %v332 = vand.u32 %v199, 4294901760
        %v333 = vsub.f32 %v199, %v332
        %v334 = vand.u32 %v333, 4294901760
        %v335 = vsub.f32 %v333, %v334
        %v336 = vand.u32 %v335, 4294901760
        %337 = vmatpush1.msra.mxu0 %v336
        %338 = vmatprep.subr.mxu0 0.0
        %v339 = vand.u32 %v200, 4294901760
        %v340 = vsub.f32 %v200, %v339
        %v341 = vand.u32 %v340, 4294901760
        %v342 = vsub.f32 %v340, %v341
        %v343 = vand.u32 %v342, 4294901760
        %344 = vmatpush1.msra.mxu0 %v343
        %345 = vmatprep.subr.mxu0 0.0
        %v346 = vand.u32 %v201, 4294901760
        %v347 = vsub.f32 %v201, %v346
        %v348 = vand.u32 %v347, 4294901760
        %v349 = vsub.f32 %v347, %v348
        %v350 = vand.u32 %v349, 4294901760
        %351 = vmatpush1.msra.mxu0 %v350
        %352 = vmatprep.subr.mxu0 0.0
        %353 = vmatpush1.msra.mxu0 0.0
        %354 = vmatprep.subr.mxu0 0.0
        %355 = vmatpush1.msra.mxu0 0.0
        %356 = vmatprep.subr.mxu0 0.0
        %357 = vmatpush1.msra.mxu0 0.0
        %358 = vmatprep.subr.mxu0 0.0
        %359 = vmatpush1.msra.mxu0 0.0
        %360 = vmatprep.subr.mxu0 0.0
        %361 = vmatpush1.msra.mxu0 0.0
        %362 = vmatprep.subr.mxu0 0.0
        %363 = vmatpush1.msra.mxu0 0.0
        %364 = vmatprep.subr.mxu0 0.0
        %365 = vmatpush1.msra.mxu0 0.0
        %366 = vmatprep.subr.mxu0 0.0
        %367 = vmatpush1.msra.mxu0 0.0
        %368 = vmatprep.subr.mxu0 0.0
        %369 = vmatpush1.msra.mxu0 0.0
        %370 = vmatprep.subr.mxu0 0.0
        %371 = vmatpush1.msra.mxu0 0.0
        %372 = vmatprep.subr.mxu0 0.0
        %373 = vmatpush1.msra.mxu0 0.0
        %374 = vmatprep.subr.mxu0 0.0
        %375 = vmatpush1.msra.mxu0 0.0
        %376 = vmatprep.subr.mxu0 0.0
        %377 = vmatpush1.msra.mxu0 0.0
        %378 = vmatprep.subr.mxu0 0.0
        %379 = vmatpush1.msra.mxu0 0.0
        %380 = vmatprep.subr.mxu0 0.0
        %381 = vmatpush1.msra.mxu0 0.0
        %382 = vmatprep.subr.mxu0 0.0
        %383 = vmatpush1.msra.mxu0 0.0
        %384 = vmatprep.subr.mxu0 0.0
        %385 = vmatpush1.msra.mxu0 0.0
        %386 = vmatprep.subr.mxu0 0.0
        %387 = vmatpush1.msra.mxu0 0.0
        %388 = vmatprep.subr.mxu0 0.0
        %389 = vmatpush1.msra.mxu0 0.0
        %390 = vmatprep.subr.mxu0 0.0
        %391 = vmatpush1.msra.mxu0 0.0
        %392 = vmatprep.subr.mxu0 0.0
        %393 = vmatpush1.msra.mxu0 0.0
        %394 = vmatprep.subr.mxu0 0.0
        %395 = vmatpush1.msra.mxu0 0.0
        %396 = vmatprep.subr.mxu0 0.0
        %397 = vmatpush1.msra.mxu0 0.0
        %398 = vmatprep.subr.mxu0 0.0
        %399 = vmatpush1.msra.mxu0 0.0
        %400 = vmatprep.subr.mxu0 0.0
        %401 = vmatpush1.msra.mxu0 0.0
        %402 = vmatprep.subr.mxu0 0.0
        %403 = vmatpush1.msra.mxu0 0.0
        %404 = vmatprep.subr.mxu0 0.0
        %405 = vmatpush1.msra.mxu0 0.0
        %406 = vmatprep.subr.mxu0 0.0
        %407 = vmatpush1.msra.mxu0 0.0
        %408 = vmatprep.mubr.f32.mxu0 0.0
        %v409 = vand.u32 %v204, 4294901760
        %410 = vmatmul.mubr.f32.gmra.mrb[0].mxu0 %v409
        %v411 = vpop.f32.mrb[0].mxu0
        %v412 = vadd.f32 %v291, %v411
        %v413 = vpop.f32.mrb[0].mxu0
        %414 = vmatprep.mubr.f32.mxu0 0.0
        %v415 = vand.u32 %v207, 4294901760
        %416 = vmatmul.mubr.f32.gmra.mrb[0].mxu0 %v415
        %v417 = vpop.f32.mrb[0].mxu0
        %v418 = vadd.f32 %v301, %v417
        %v419 = vpop.f32.mrb[0].mxu0
        %420 = vmatprep.mubr.f32.mxu0 0.0
        %v421 = vand.u32 %v210, 4294901760
        %422 = vmatmul.mubr.f32.gmra.mrb[0].mxu0 %v421
        %v423 = vpop.f32.mrb[0].mxu0
        %v424 = vadd.f32 %v311, %v423
        %v425 = vpop.f32.mrb[0].mxu0
        %426 = vmatprep.mubr.f32.mxu0 0.0
        %v427 = vand.u32 %v213, 4294901760
        %428 = vmatmul.mubr.f32.gmra.mrb[0].mxu0 %v427
        %v429 = vpop.f32.mrb[0].mxu0
        %v430 = vadd.f32 %v321, %v429
        %v431 = vpop.f32.mrb[0].mxu0
        %432 = vdwg.mxu0
        %433 = vmatprep.subr.mxu0 0.0
        %v434 = vand.u32 %v198, 4294901760
        %v435 = vsub.f32 %v198, %v434
        %436 = vmatpush1.msra.mxu0 %v435
        %437 = vmatprep.subr.mxu0 0.0
        %v438 = vand.u32 %v199, 4294901760
        %v439 = vsub.f32 %v199, %v438
        %440 = vmatpush1.msra.mxu0 %v439
        %441 = vmatprep.subr.mxu0 0.0
        %v442 = vand.u32 %v200, 4294901760
        %v443 = vsub.f32 %v200, %v442
        %444 = vmatpush1.msra.mxu0 %v443
        %445 = vmatprep.subr.mxu0 0.0
        %v446 = vand.u32 %v201, 4294901760
        %v447 = vsub.f32 %v201, %v446
        %448 = vmatpush1.msra.mxu0 %v447
        %449 = vmatprep.subr.mxu0 0.0
        %450 = vmatpush1.msra.mxu0 0.0
        %451 = vmatprep.subr.mxu0 0.0
        %452 = vmatpush1.msra.mxu0 0.0
        %453 = vmatprep.subr.mxu0 0.0
        %454 = vmatpush1.msra.mxu0 0.0
        %455 = vmatprep.subr.mxu0 0.0
        %456 = vmatpush1.msra.mxu0 0.0
        %457 = vmatprep.subr.mxu0 0.0
        %458 = vmatpush1.msra.mxu0 0.0
        %459 = vmatprep.subr.mxu0 0.0
        %460 = vmatpush1.msra.mxu0 0.0
        %461 = vmatprep.subr.mxu0 0.0
        %462 = vmatpush1.msra.mxu0 0.0
        %463 = vmatprep.subr.mxu0 0.0
        %464 = vmatpush1.msra.mxu0 0.0
        %465 = vmatprep.subr.mxu0 0.0
        %466 = vmatpush1.msra.mxu0 0.0
        %467 = vmatprep.subr.mxu0 0.0
        %468 = vmatpush1.msra.mxu0 0.0
        %469 = vmatprep.subr.mxu0 0.0
        %470 = vmatpush1.msra.mxu0 0.0
        %471 = vmatprep.subr.mxu0 0.0
        %472 = vmatpush1.msra.mxu0 0.0
        %473 = vmatprep.subr.mxu0 0.0
        %474 = vmatpush1.msra.mxu0 0.0
        %475 = vmatprep.subr.mxu0 0.0
        %476 = vmatpush1.msra.mxu0 0.0
        %477 = vmatprep.subr.mxu0 0.0
        %478 = vmatpush1.msra.mxu0 0.0
        %479 = vmatprep.subr.mxu0 0.0
        %480 = vmatpush1.msra.mxu0 0.0
        %481 = vmatprep.subr.mxu0 0.0
        %482 = vmatpush1.msra.mxu0 0.0
        %483 = vmatprep.subr.mxu0 0.0
        %484 = vmatpush1.msra.mxu0 0.0
        %485 = vmatprep.subr.mxu0 0.0
        %486 = vmatpush1.msra.mxu0 0.0
        %487 = vmatprep.subr.mxu0 0.0
        %488 = vmatpush1.msra.mxu0 0.0
        %489 = vmatprep.subr.mxu0 0.0
        %490 = vmatpush1.msra.mxu0 0.0
        %491 = vmatprep.subr.mxu0 0.0
        %492 = vmatpush1.msra.mxu0 0.0
        %493 = vmatprep.subr.mxu0 0.0
        %494 = vmatpush1.msra.mxu0 0.0
        %495 = vmatprep.subr.mxu0 0.0
        %496 = vmatpush1.msra.mxu0 0.0
        %497 = vmatprep.subr.mxu0 0.0
        %498 = vmatpush1.msra.mxu0 0.0
        %499 = vmatprep.subr.mxu0 0.0
        %500 = vmatpush1.msra.mxu0 0.0
        %501 = vmatprep.subr.mxu0 0.0
        %502 = vmatpush1.msra.mxu0 0.0
        %503 = vmatprep.subr.mxu0 0.0
        %504 = vmatpush1.msra.mxu0 0.0
        %505 = vmatprep.mubr.f32.mxu0 0.0
        %v506 = vand.u32 %v204, 4294901760
        %v507 = vsub.f32 %v204, %v506
        %508 = vmatmul.mubr.f32.gmra.mrb[0].mxu0 %v507
        %v509 = vpop.f32.mrb[0].mxu0
        %v510 = vadd.f32 %v412, %v509
        %v511 = vpop.f32.mrb[0].mxu0
        %512 = vmatprep.mubr.f32.mxu0 0.0
        %v513 = vand.u32 %v207, 4294901760
        %v514 = vsub.f32 %v207, %v513
        %515 = vmatmul.mubr.f32.gmra.mrb[0].mxu0 %v514
        %v516 = vpop.f32.mrb[0].mxu0
        %v517 = vadd.f32 %v418, %v516
        %v518 = vpop.f32.mrb[0].mxu0
        %519 = vmatprep.mubr.f32.mxu0 0.0
        %v520 = vand.u32 %v210, 4294901760
        %v521 = vsub.f32 %v210, %v520
        %522 = vmatmul.mubr.f32.gmra.mrb[0].mxu0 %v521
        %v523 = vpop.f32.mrb[0].mxu0
        %v524 = vadd.f32 %v424, %v523
        %v525 = vpop.f32.mrb[0].mxu0
        %526 = vmatprep.mubr.f32.mxu0 0.0
        %v527 = vand.u32 %v213, 4294901760
        %v528 = vsub.f32 %v213, %v527
        %529 = vmatmul.mubr.f32.gmra.mrb[0].mxu0 %v528
        %v530 = vpop.f32.mrb[0].mxu0
        %v531 = vadd.f32 %v430, %v530
        %v532 = vpop.f32.mrb[0].mxu0
        %533 = vdwg.mxu0
        %534 = vmatprep.subr.mxu0 0.0
        %v535 = vand.u32 %v198, 4294901760
        %536 = vmatpush1.msra.mxu0 %v535
        %537 = vmatprep.subr.mxu0 0.0
        %v538 = vand.u32 %v199, 4294901760
        %539 = vmatpush1.msra.mxu0 %v538
        %540 = vmatprep.subr.mxu0 0.0
        %v541 = vand.u32 %v200, 4294901760
        %542 = vmatpush1.msra.mxu0 %v541
        %543 = vmatprep.subr.mxu0 0.0
        %v544 = vand.u32 %v201, 4294901760
        %545 = vmatpush1.msra.mxu0 %v544
        %546 = vmatprep.subr.mxu0 0.0
        %547 = vmatpush1.msra.mxu0 0.0
        %548 = vmatprep.subr.mxu0 0.0
        %549 = vmatpush1.msra.mxu0 0.0
        %550 = vmatprep.subr.mxu0 0.0
        %551 = vmatpush1.msra.mxu0 0.0
        %552 = vmatprep.subr.mxu0 0.0
        %553 = vmatpush1.msra.mxu0 0.0
        %554 = vmatprep.subr.mxu0 0.0
        %555 = vmatpush1.msra.mxu0 0.0
        %556 = vmatprep.subr.mxu0 0.0
        %557 = vmatpush1.msra.mxu0 0.0
        %558 = vmatprep.subr.mxu0 0.0
        %559 = vmatpush1.msra.mxu0 0.0
        %560 = vmatprep.subr.mxu0 0.0
        %561 = vmatpush1.msra.mxu0 0.0
        %562 = vmatprep.subr.mxu0 0.0
        %563 = vmatpush1.msra.mxu0 0.0
        %564 = vmatprep.subr.mxu0 0.0
        %565 = vmatpush1.msra.mxu0 0.0
        %566 = vmatprep.subr.mxu0 0.0
        %567 = vmatpush1.msra.mxu0 0.0
        %568 = vmatprep.subr.mxu0 0.0
        %569 = vmatpush1.msra.mxu0 0.0
        %570 = vmatprep.subr.mxu0 0.0
        %571 = vmatpush1.msra.mxu0 0.0
        %572 = vmatprep.subr.mxu0 0.0
        %573 = vmatpush1.msra.mxu0 0.0
        %574 = vmatprep.subr.mxu0 0.0
        %575 = vmatpush1.msra.mxu0 0.0
        %576 = vmatprep.subr.mxu0 0.0
        %577 = vmatpush1.msra.mxu0 0.0
        %578 = vmatprep.subr.mxu0 0.0
        %579 = vmatpush1.msra.mxu0 0.0
        %580 = vmatprep.subr.mxu0 0.0
        %581 = vmatpush1.msra.mxu0 0.0
        %582 = vmatprep.subr.mxu0 0.0
        %583 = vmatpush1.msra.mxu0 0.0
        %584 = vmatprep.subr.mxu0 0.0
        %585 = vmatpush1.msra.mxu0 0.0
        %586 = vmatprep.subr.mxu0 0.0
        %587 = vmatpush1.msra.mxu0 0.0
        %588 = vmatprep.subr.mxu0 0.0
        %589 = vmatpush1.msra.mxu0 0.0
        %590 = vmatprep.subr.mxu0 0.0
        %591 = vmatpush1.msra.mxu0 0.0
        %592 = vmatprep.subr.mxu0 0.0
        %593 = vmatpush1.msra.mxu0 0.0
        %594 = vmatprep.subr.mxu0 0.0
        %595 = vmatpush1.msra.mxu0 0.0
        %596 = vmatprep.subr.mxu0 0.0
        %597 = vmatpush1.msra.mxu0 0.0
        %598 = vmatprep.subr.mxu0 0.0
        %599 = vmatpush1.msra.mxu0 0.0
        %600 = vmatprep.subr.mxu0 0.0
        %601 = vmatpush1.msra.mxu0 0.0
        %602 = vmatprep.mubr.f32.mxu0 0.0
        %v603 = vand.u32 %v204, 4294901760
        %v604 = vsub.f32 %v204, %v603
        %v605 = vand.u32 %v604, 4294901760
        %606 = vmatmul.mubr.f32.gmra.mrb[0].mxu0 %v605
        %v607 = vpop.f32.mrb[0].mxu0
        %v608 = vadd.f32 %v510, %v607
        %v609 = vpop.f32.mrb[0].mxu0
        %610 = vmatprep.mubr.f32.mxu0 0.0
        %v611 = vand.u32 %v207, 4294901760
        %v612 = vsub.f32 %v207, %v611
        %v613 = vand.u32 %v612, 4294901760
        %614 = vmatmul.mubr.f32.gmra.mrb[0].mxu0 %v613
        %v615 = vpop.f32.mrb[0].mxu0
        %v616 = vadd.f32 %v517, %v615
        %v617 = vpop.f32.mrb[0].mxu0
        %618 = vmatprep.mubr.f32.mxu0 0.0
        %v619 = vand.u32 %v210, 4294901760
        %v620 = vsub.f32 %v210, %v619
        %v621 = vand.u32 %v620, 4294901760
        %622 = vmatmul.mubr.f32.gmra.mrb[0].mxu0 %v621
        %v623 = vpop.f32.mrb[0].mxu0
        %v624 = vadd.f32 %v524, %v623
        %v625 = vpop.f32.mrb[0].mxu0
        %626 = vmatprep.mubr.f32.mxu0 0.0
        %v627 = vand.u32 %v213, 4294901760
        %v628 = vsub.f32 %v213, %v627
        %v629 = vand.u32 %v628, 4294901760
        %630 = vmatmul.mubr.f32.gmra.mrb[0].mxu0 %v629
        %v631 = vpop.f32.mrb[0].mxu0
        %v632 = vadd.f32 %v531, %v631
        %v633 = vpop.f32.mrb[0].mxu0
        %634 = vdwg.mxu0
        %635 = vmatprep.subr.mxu0 0.0
        %v636 = vand.u32 %v198, 4294901760
        %v637 = vsub.f32 %v198, %v636
        %v638 = vand.u32 %v637, 4294901760
        %639 = vmatpush1.msra.mxu0 %v638
        %640 = vmatprep.subr.mxu0 0.0
        %v641 = vand.u32 %v199, 4294901760
        %v642 = vsub.f32 %v199, %v641
        %v643 = vand.u32 %v642, 4294901760
        %644 = vmatpush1.msra.mxu0 %v643
        %645 = vmatprep.subr.mxu0 0.0
        %v646 = vand.u32 %v200, 4294901760
        %v647 = vsub.f32 %v200, %v646
        %v648 = vand.u32 %v647, 4294901760
        %649 = vmatpush1.msra.mxu0 %v648
        %650 = vmatprep.subr.mxu0 0.0
        %v651 = vand.u32 %v201, 4294901760
        %v652 = vsub.f32 %v201, %v651
        %v653 = vand.u32 %v652, 4294901760
        %654 = vmatpush1.msra.mxu0 %v653
        %655 = vmatprep.subr.mxu0 0.0
        %656 = vmatpush1.msra.mxu0 0.0
        %657 = vmatprep.subr.mxu0 0.0
        %658 = vmatpush1.msra.mxu0 0.0
        %659 = vmatprep.subr.mxu0 0.0
        %660 = vmatpush1.msra.mxu0 0.0
        %661 = vmatprep.subr.mxu0 0.0
        %662 = vmatpush1.msra.mxu0 0.0
        %663 = vmatprep.subr.mxu0 0.0
        %664 = vmatpush1.msra.mxu0 0.0
        %665 = vmatprep.subr.mxu0 0.0
        %666 = vmatpush1.msra.mxu0 0.0
        %667 = vmatprep.subr.mxu0 0.0
        %668 = vmatpush1.msra.mxu0 0.0
        %669 = vmatprep.subr.mxu0 0.0
        %670 = vmatpush1.msra.mxu0 0.0
        %671 = vmatprep.subr.mxu0 0.0
        %672 = vmatpush1.msra.mxu0 0.0
        %673 = vmatprep.subr.mxu0 0.0
        %674 = vmatpush1.msra.mxu0 0.0
        %675 = vmatprep.subr.mxu0 0.0
        %676 = vmatpush1.msra.mxu0 0.0
        %677 = vmatprep.subr.mxu0 0.0
        %678 = vmatpush1.msra.mxu0 0.0
        %679 = vmatprep.subr.mxu0 0.0
        %680 = vmatpush1.msra.mxu0 0.0
        %681 = vmatprep.subr.mxu0 0.0
        %682 = vmatpush1.msra.mxu0 0.0
        %683 = vmatprep.subr.mxu0 0.0
        %684 = vmatpush1.msra.mxu0 0.0
        %685 = vmatprep.subr.mxu0 0.0
        %686 = vmatpush1.msra.mxu0 0.0
        %687 = vmatprep.subr.mxu0 0.0
        %688 = vmatpush1.msra.mxu0 0.0
        %689 = vmatprep.subr.mxu0 0.0
        %690 = vmatpush1.msra.mxu0 0.0
        %691 = vmatprep.subr.mxu0 0.0
        %692 = vmatpush1.msra.mxu0 0.0
        %693 = vmatprep.subr.mxu0 0.0
        %694 = vmatpush1.msra.mxu0 0.0
        %695 = vmatprep.subr.mxu0 0.0
        %696 = vmatpush1.msra.mxu0 0.0
        %697 = vmatprep.subr.mxu0 0.0
        %698 = vmatpush1.msra.mxu0 0.0
        %699 = vmatprep.subr.mxu0 0.0
        %700 = vmatpush1.msra.mxu0 0.0
        %701 = vmatprep.subr.mxu0 0.0
        %702 = vmatpush1.msra.mxu0 0.0
        %703 = vmatprep.subr.mxu0 0.0
        %704 = vmatpush1.msra.mxu0 0.0
        %705 = vmatprep.subr.mxu0 0.0
        %706 = vmatpush1.msra.mxu0 0.0
        %707 = vmatprep.subr.mxu0 0.0
        %708 = vmatpush1.msra.mxu0 0.0
        %709 = vmatprep.subr.mxu0 0.0
        %710 = vmatpush1.msra.mxu0 0.0
        %711 = vmatprep.mubr.f32.mxu0 0.0
        %v712 = vand.u32 %v204, 4294901760
        %713 = vmatmul.mubr.f32.gmra.mrb[0].mxu0 %v712
        %v714 = vpop.f32.mrb[0].mxu0
        %v715 = vadd.f32 %v608, %v714
        %v716 = vpop.f32.mrb[0].mxu0
        %717 = vmatprep.mubr.f32.mxu0 0.0
        %v718 = vand.u32 %v207, 4294901760
        %719 = vmatmul.mubr.f32.gmra.mrb[0].mxu0 %v718
        %v720 = vpop.f32.mrb[0].mxu0
        %v721 = vadd.f32 %v616, %v720
        %v722 = vpop.f32.mrb[0].mxu0
        %723 = vmatprep.mubr.f32.mxu0 0.0
        %v724 = vand.u32 %v210, 4294901760
        %725 = vmatmul.mubr.f32.gmra.mrb[0].mxu0 %v724
        %v726 = vpop.f32.mrb[0].mxu0
        %v727 = vadd.f32 %v624, %v726
        %v728 = vpop.f32.mrb[0].mxu0
        %729 = vmatprep.mubr.f32.mxu0 0.0
        %v730 = vand.u32 %v213, 4294901760
        %731 = vmatmul.mubr.f32.gmra.mrb[0].mxu0 %v730
        %v732 = vpop.f32.mrb[0].mxu0
        %v733 = vadd.f32 %v632, %v732
        %v734 = vpop.f32.mrb[0].mxu0
        %735 = vdwg.mxu0
        %736 = vmatprep.subr.mxu0 0.0
        %v737 = vand.u32 %v198, 4294901760
        %738 = vmatpush1.msra.mxu0 %v737
        %739 = vmatprep.subr.mxu0 0.0
        %v740 = vand.u32 %v199, 4294901760
        %741 = vmatpush1.msra.mxu0 %v740
        %742 = vmatprep.subr.mxu0 0.0
        %v743 = vand.u32 %v200, 4294901760
        %744 = vmatpush1.msra.mxu0 %v743
        %745 = vmatprep.subr.mxu0 0.0
        %v746 = vand.u32 %v201, 4294901760
        %747 = vmatpush1.msra.mxu0 %v746
        %748 = vmatprep.subr.mxu0 0.0
        %749 = vmatpush1.msra.mxu0 0.0
        %750 = vmatprep.subr.mxu0 0.0
        %751 = vmatpush1.msra.mxu0 0.0
        %752 = vmatprep.subr.mxu0 0.0
        %753 = vmatpush1.msra.mxu0 0.0
        %754 = vmatprep.subr.mxu0 0.0
        %755 = vmatpush1.msra.mxu0 0.0
        %756 = vmatprep.subr.mxu0 0.0
        %757 = vmatpush1.msra.mxu0 0.0
        %758 = vmatprep.subr.mxu0 0.0
        %759 = vmatpush1.msra.mxu0 0.0
        %760 = vmatprep.subr.mxu0 0.0
        %761 = vmatpush1.msra.mxu0 0.0
        %762 = vmatprep.subr.mxu0 0.0
        %763 = vmatpush1.msra.mxu0 0.0
        %764 = vmatprep.subr.mxu0 0.0
        %765 = vmatpush1.msra.mxu0 0.0
        %766 = vmatprep.subr.mxu0 0.0
        %767 = vmatpush1.msra.mxu0 0.0
        %768 = vmatprep.subr.mxu0 0.0
        %769 = vmatpush1.msra.mxu0 0.0
        %770 = vmatprep.subr.mxu0 0.0
        %771 = vmatpush1.msra.mxu0 0.0
        %772 = vmatprep.subr.mxu0 0.0
        %773 = vmatpush1.msra.mxu0 0.0
        %774 = vmatprep.subr.mxu0 0.0
        %775 = vmatpush1.msra.mxu0 0.0
        %776 = vmatprep.subr.mxu0 0.0
        %777 = vmatpush1.msra.mxu0 0.0
        %778 = vmatprep.subr.mxu0 0.0
        %779 = vmatpush1.msra.mxu0 0.0
        %780 = vmatprep.subr.mxu0 0.0
        %781 = vmatpush1.msra.mxu0 0.0
        %782 = vmatprep.subr.mxu0 0.0
        %783 = vmatpush1.msra.mxu0 0.0
        %784 = vmatprep.subr.mxu0 0.0
        %785 = vmatpush1.msra.mxu0 0.0
        %786 = vmatprep.subr.mxu0 0.0
        %787 = vmatpush1.msra.mxu0 0.0
        %788 = vmatprep.subr.mxu0 0.0
        %789 = vmatpush1.msra.mxu0 0.0
        %790 = vmatprep.subr.mxu0 0.0
        %791 = vmatpush1.msra.mxu0 0.0
        %792 = vmatprep.subr.mxu0 0.0
        %793 = vmatpush1.msra.mxu0 0.0
        %794 = vmatprep.subr.mxu0 0.0
        %795 = vmatpush1.msra.mxu0 0.0
        %796 = vmatprep.subr.mxu0 0.0
        %797 = vmatpush1.msra.mxu0 0.0
        %798 = vmatprep.subr.mxu0 0.0
        %799 = vmatpush1.msra.mxu0 0.0
        %800 = vmatprep.subr.mxu0 0.0
        %801 = vmatpush1.msra.mxu0 0.0
        %802 = vmatprep.subr.mxu0 0.0
        %803 = vmatpush1.msra.mxu0 0.0
        %804 = vmatprep.mubr.f32.mxu0 0.0
        %v805 = vand.u32 %v204, 4294901760
        %806 = vmatmul.mubr.f32.gmra.mrb[0].mxu0 %v805
        %v807 = vpop.f32.mrb[0].mxu0
        %v808 = vadd.f32 %v715, %v807
        %v809 = vpop.f32.mrb[0].mxu0
        %810 = vmatprep.mubr.f32.mxu0 0.0
        %v811 = vand.u32 %v207, 4294901760
        %812 = vmatmul.mubr.f32.gmra.mrb[0].mxu0 %v811
        %v813 = vpop.f32.mrb[0].mxu0
        %v814 = vadd.f32 %v721, %v813
        %v815 = vpop.f32.mrb[0].mxu0
        %816 = vmatprep.mubr.f32.mxu0 0.0
        %v817 = vand.u32 %v210, 4294901760
        %818 = vmatmul.mubr.f32.gmra.mrb[0].mxu0 %v817
        %v819 = vpop.f32.mrb[0].mxu0
        %v820 = vadd.f32 %v727, %v819
        %v821 = vpop.f32.mrb[0].mxu0
        %822 = vmatprep.mubr.f32.mxu0 0.0
        %v823 = vand.u32 %v213, 4294901760
        %824 = vmatmul.mubr.f32.gmra.mrb[0].mxu0 %v823
        %v825 = vpop.f32.mrb[0].mxu0
        %v826 = vadd.f32 %v733, %v825
        %v827 = vpop.f32.mrb[0].mxu0
        %828 = vdwg.mxu0
        %829 = vst [vmem:[%s193] sm:$0xff] %v808
        %830 = vst [vmem:[%s193 + $0x8] sm:$0xff] %v814
        %831 = vst [vmem:[%s193 + $0x10] sm:$0xff] %v820
        %832 = vst [vmem:[%s193 + $0x18] sm:$0xff] %v826
        %s833 = sand.u32 %s91, 1
        %s834 = scalar_lea.sflag [#allocation4], %s833
        %s835 = sand.u32 %s91, 1
        %s836 = smul.addr %s835, 32
        %s837 = scalar_lea.vmem [#allocation7], %s836
        // Predicated region
        $region37: #{tpu_custom_call.1} parent=27 // pred_check
          %p838 = pneg %p101
        $region38: #{tpu_custom_call.1} parent=27 // pred_check_branch
          %840 = sbr.rel (%p838) target = $region40
        $region39: #{tpu_custom_call.1} parent=27 // pred_region
          %s842 = ssub.s32 512, 512
          %843 = vsyncadd %s834, %s842
          %s844 = smul.addr %s24, 4
          %s845 = sadd.s32 %s25, %s844
          %s846 = smul.addr %s845, 128
          %s847 = scalar_lea.hbm %s2, %s846
          %s848 = sshll.u32 %s837, 4
          %s849 = int_to_ptr.vmem [resolvable:$true] %s848
          %854 = dma.vmem_to_hbm [thread:$0]  %s849, 512, %s847, %s834, 128, 128, 8
        $region40: #{tpu_custom_call.1} parent=27 // pred_fallthru
          _
      $region28: #{tpu_custom_call.1} parent=5 // pred_fallthru
        _
      %p855 = scmp.le.s32.totalorder 2, %s15
      // Predicated region
      $region41: #{tpu_custom_call.1} parent=5 // pred_check
        %p856 = pneg %p855
      $region42: #{tpu_custom_call.1} parent=5 // pred_check_branch
        %858 = sbr.rel (%p856) target = $region44
      $region43: #{tpu_custom_call.1} parent=5 // pred_region
        %s859 = ssub.s32 %s15, 2
        // Predicated region
        $region45: #{tpu_custom_call.1} parent=43 // pred_check
          %p860 = pneg %p107
        $region46: #{tpu_custom_call.1} parent=43 // pred_check_branch
          %862 = sbr.rel (%p860) target = $region48
        $region47: #{tpu_custom_call.1} parent=43 // pred_region
          %s863 = sand.u32 %s92, 1
          %s864 = scalar_lea.sflag [#allocation4], %s863
          %s865 = sand.u32 %s92, 1
          %s866 = smul.addr %s865, 32
          %s867 = scalar_lea.vmem [#allocation7], %s866
          %868 = dma.done %s864, 512
        $region48: #{tpu_custom_call.1} parent=43 // pred_fallthru
          _
      $region44: #{tpu_custom_call.1} parent=5 // pred_fallthru
        _
    $region6: #{tpu_custom_call.1} parent=1 // loop_footer
      %s19 = sadd.s32 1, %s15
    $region7: #{tpu_custom_call.1} parent=1 // loop_footer_branch
      %14 = sbr.rel target = $region3
    $region8: #{tpu_custom_call.1} parent=1 // loop_exit
      _
    %869 = vsyncpa [#allocation3], 1
    %s870 = scalar_lea.sflag [#allocation3], 1
    %871 = vsyncpa %s870, 1
    %872 = vsyncpa [#allocation6], 1
    %s873 = scalar_lea.sflag [#allocation6], 1
    %874 = vsyncpa %s873, 1
    %875 = vsyncpa [#allocation4], 1
    %s876 = scalar_lea.sflag [#allocation4], 1
    %877 = vsyncpa %s876, 1

</llo_original>
